<compile_context>
chip_gen: v7x
topology: tpu7x:2x2x1
jax: 0.10.0
libtpu: 0.0.40
codegen_flags: <defaults>
</compile_context>

<pallas_src>
import functools

import jax
import jax.numpy as jnp
from jax import lax
from jax.experimental import pallas as pl
from jax.experimental.pallas import tpu as pltpu


def _round_up(a: int, b: int) -> int:
    return -(-a // b) * b


def _hash_bits_u32(row, col, seed):
    """Counter-based hash -> uniform uint32 bits, order/tile independent."""
    h = (row * jnp.uint32(0x9E3779B1)
         + col * jnp.uint32(0x85EBCA77)
         + jnp.uint32(seed))
    h = h ^ (h >> 15)
    h = h * jnp.uint32(0x2C1B3C6D)
    h = h ^ (h >> 12)
    h = h * jnp.uint32(0x297A2D39)
    h = h ^ (h >> 15)
    return h


def _ffn_kernel(x_ref, w1_ref, b1_ref, w2_ref, b2_ref, o_ref, acc_ref,
                *, p, seed, tm, tk):
    k = pl.program_id(1)

    @pl.when(k == 0)
    def _():
        acc_ref[...] = jnp.zeros_like(acc_ref)

    # h_k = relu(x @ W1[:, k_slab] + b1[k_slab])      -- (tm, tk) slab of h
    h = jnp.dot(x_ref[...], w1_ref[...], preferred_element_type=jnp.float32)
    h = jnp.maximum(h + b1_ref[...], 0.0)

    # Dropout (training semantics): zero with prob p, scale survivors by 1/(1-p).
    # Mask is a function of the *global* (row, col) element coordinates and the
    # seed only, so it is independent of tiling / grid traversal order.
    if p > 0.0:
        i = pl.program_id(0)
        row = (lax.broadcasted_iota(jnp.int32, (tm, tk), 0) + i * tm
               ).astype(jnp.uint32)
        col = (lax.broadcasted_iota(jnp.int32, (tm, tk), 1) + k * tk
               ).astype(jnp.uint32)
        bits = _hash_bits_u32(row, col, seed)
        thresh = jnp.uint32(min(int(p * (2 ** 32)), 2 ** 32 - 1))
        keep = bits >= thresh
        h = jnp.where(keep, h * (1.0 / (1.0 - p)), 0.0)

    # acc += h_k @ W2[k_slab, :]
    # (for bf16 inputs the MXU operands stay bf16 with an f32 accumulator)
    acc_ref[...] += jnp.dot(h.astype(w2_ref.dtype), w2_ref[...],
                            preferred_element_type=jnp.float32)

    @pl.when(k == pl.num_programs(1) - 1)
    def _():
        o_ref[...] = (acc_ref[...] + b2_ref[...]).astype(o_ref.dtype)


def feed_forward_block(x, w1, b1, w2, b2, *, dropout_p=0.0, seed=0,
                       tm=256, tk=512):
    """x: (batch, seq, d_model); w1: (d_model, d_ff); w2: (d_ff, d_model)."""
    p = float(dropout_p)
    if not (0.0 <= p < 1.0):
        raise ValueError("dropout_p must be in [0, 1).")

    batch, seq, d_model = x.shape
    d_ff = w1.shape[1]
    n = batch * seq

    # ---- row tiling (pad N up to a multiple of the row tile) ----------------
    tm_eff = max(8, (min(tm, max(n, 8)) // 8) * 8)
    n_pad = _round_up(n, tm_eff)

    x2 = x.reshape(n, d_model)
    if n_pad != n:
        x2 = jnp.pad(x2, ((0, n_pad - n), (0, 0)))

    # ---- d_ff tiling (pad d_ff with zero columns/rows if needed) ------------
    if d_ff > tk:
        tk_eff = max(128, (tk // 128) * 128)
        d_ff_pad = _round_up(d_ff, tk_eff)
    else:
        tk_eff = d_ff
        d_ff_pad = d_ff
    if d_ff_pad != d_ff:
        pad = d_ff_pad - d_ff
        w1 = jnp.pad(w1, ((0, 0), (0, pad)))
        b1 = jnp.pad(b1, ((0, pad),))
        w2 = jnp.pad(w2, ((0, pad), (0, 0)))

    b1_2 = b1.reshape(1, d_ff_pad)
    b2_2 = b2.reshape(1, d_model)

    grid_m = n_pad // tm_eff
    grid_k = d_ff_pad // tk_eff

    kernel = functools.partial(_ffn_kernel, p=p,
                               seed=int(seed) & 0xFFFFFFFF,
                               tm=tm_eff, tk=tk_eff)

    itemsize = jnp.dtype(x.dtype).itemsize
    cost = pl.CostEstimate(
        flops=4 * n_pad * d_model * d_ff_pad,
        transcendentals=0,
        bytes_accessed=itemsize * (2 * n_pad * d_model
                                   + 2 * d_model * d_ff_pad
                                   + d_ff_pad + d_model),
    )

    out = pl.pallas_call(
        kernel,
        out_shape=jax.ShapeDtypeStruct((n_pad, d_model), x.dtype),
        grid_spec=pltpu.PrefetchScalarGridSpec(
            num_scalar_prefetch=0,
            grid=(grid_m, grid_k),
            in_specs=[
                pl.BlockSpec((tm_eff, d_model), lambda i, k: (i, 0)),   # x rows
                pl.BlockSpec((d_model, tk_eff), lambda i, k: (0, k)),   # W1 slab
                pl.BlockSpec((1, tk_eff), lambda i, k: (0, k)),         # b1 slab
                pl.BlockSpec((tk_eff, d_model), lambda i, k: (k, 0)),   # W2 slab
                pl.BlockSpec((1, d_model), lambda i, k: (0, 0)),        # b2
            ],
            out_specs=pl.BlockSpec((tm_eff, d_model), lambda i, k: (i, 0)),
            scratch_shapes=[pltpu.VMEM((tm_eff, d_model), jnp.float32)],
        ),
        compiler_params=pltpu.CompilerParams(
            dimension_semantics=("parallel", "arbitrary"),
            vmem_limit_bytes=48 * 1024 * 1024,   # safe on v5e/v6e/v7x
        ),
        cost_estimate=cost,
    )(x2, w1, b1_2, w2, b2_2)

    if n_pad != n:
        out = out[:n]
    return out.reshape(batch, seq, d_model)


if __name__ == "__main__":
    # Small shapes consistent with the module: (batch, seq, d_model) -> d_ff.
    batch, seq, d_model, d_ff = 2, 8, 32, 64
    dropout_p = 0.1

    key = jax.random.PRNGKey(0)
    kx, k1, k2, k3, k4 = jax.random.split(key, 5)

    x = jax.random.normal(kx, (batch, seq, d_model), dtype=jnp.float32)

    # Deterministic parameter init (uniform, roughly matching nn.Linear scale).
    lim1 = 1.0 / (d_model ** 0.5)
    lim2 = 1.0 / (d_ff ** 0.5)
    w1 = jax.random.uniform(k1, (d_model, d_ff), jnp.float32, -lim1, lim1)
    b1 = jax.random.uniform(k2, (d_ff,), jnp.float32, -lim1, lim1)
    w2 = jax.random.uniform(k3, (d_ff, d_model), jnp.float32, -lim2, lim2)
    b2 = jax.random.uniform(k4, (d_model,), jnp.float32, -lim2, lim2)

    # Run once with dropout enabled (training semantics).
    y = feed_forward_block(x, w1, b1, w2, b2, dropout_p=dropout_p, seed=42)
    jax.block_until_ready(y)
    assert y.shape == (batch, seq, d_model)

    # Sanity check against pure-JAX reference with dropout disabled.
    y_ref = jnp.maximum(x @ w1 + b1, 0.0) @ w2 + b2
    y_nodrop = feed_forward_block(x, w1, b1, w2, b2, dropout_p=0.0)
    jax.block_until_ready(y_nodrop)
    assert jnp.allclose(y_nodrop, y_ref, atol=1e-5, rtol=1e-5)

    print("KERNEL_OK")
</pallas_src>

<mosaic_0001>
module attributes {stable_mosaic.version = 11 : i64} {
  func.func @_ffn_kernel(%arg0: i32, %arg1: i32, %arg2: memref<16x32xf32, #tpu.memory_space<vmem>>, %arg3: memref<32x64xf32, #tpu.memory_space<vmem>>, %arg4: memref<1x64xf32, #tpu.memory_space<vmem>>, %arg5: memref<64x32xf32, #tpu.memory_space<vmem>>, %arg6: memref<1x32xf32, #tpu.memory_space<vmem>>, %arg7: memref<16x32xf32, #tpu.memory_space<vmem>>, %arg8: memref<16x32xf32, #tpu.memory_space<vmem>>) attributes {dimension_semantics = [#tpu.dimension_semantics<parallel>, #tpu.dimension_semantics<arbitrary>], iteration_bounds = array<i64: 1, 1>, scalar_prefetch = 0 : i64, scratch_operands = 1 : i64, tpu.core_type = #tpu.core_type<tc>, window_params = [{transform_indices = @transform_0, window_bounds = array<i64: 16, 32>}, {transform_indices = @transform_1, window_bounds = array<i64: 32, 64>}, {transform_indices = @transform_2, window_bounds = array<i64: 1, 64>}, {transform_indices = @transform_3, window_bounds = array<i64: 64, 32>}, {pipeline_mode = #tpu.pipeline_mode<synchronous>, transform_indices = @transform_4, window_bounds = array<i64: 1, 32>}, {transform_indices = @transform_5, window_bounds = array<i64: 16, 32>}]} {
    %c0_i32 = arith.constant 0 : i32
    %0 = arith.cmpi eq, %arg1, %c0_i32 : i32
    %1 = arith.extui %0 : i1 to i32
    %c0_i32_0 = arith.constant 0 : i32
    %2 = arith.cmpi ne, %1, %c0_i32_0 : i32
    scf.if %2 {
      %cst_19 = arith.constant 0.000000e+00 : f32
      %53 = vector.broadcast %cst_19 : f32 to vector<16x32xf32>
      %c0_20 = arith.constant 0 : index
      %c0_21 = arith.constant 0 : index
      %54 = vector.load %arg8[%c0_20, %c0_21] : memref<16x32xf32, #tpu.memory_space<vmem>>, vector<16x32xf32>
      tpu.vector_store %arg8[%c0_20, %c0_21], %53 {strides = array<i32>} : memref<16x32xf32, #tpu.memory_space<vmem>>, vector<16x32xf32>,
    } else {
    }
    %c0 = arith.constant 0 : index
    %c0_1 = arith.constant 0 : index
    %3 = vector.load %arg2[%c0, %c0_1] : memref<16x32xf32, #tpu.memory_space<vmem>>, vector<16x32xf32>
    %c0_2 = arith.constant 0 : index
    %c0_3 = arith.constant 0 : index
    %4 = vector.load %arg3[%c0_2, %c0_3] : memref<32x64xf32, #tpu.memory_space<vmem>>, vector<32x64xf32>
    %cst = arith.constant dense<0.000000e+00> : vector<16x64xf32>
    %5 = tpu.matmul %3, %4, %cst {dimension_numbers = #tpu.dot_dimension_numbers<[1], [0], [0], [1], [0, 0, 1, 1], [], []>} : vector<16x32xf32>, vector<32x64xf32>, vector<16x64xf32> -> vector<16x64xf32>
    %c0_4 = arith.constant 0 : index
    %c0_5 = arith.constant 0 : index
    %6 = vector.load %arg4[%c0_4, %c0_5] : memref<1x64xf32, #tpu.memory_space<vmem>>, vector<1x64xf32>
    %7 = vector.broadcast %6 : vector<1x64xf32> to vector<16x64xf32>
    %8 = arith.addf %5, %7 : vector<16x64xf32>
    %cst_6 = arith.constant 0.000000e+00 : f32
    %9 = vector.broadcast %cst_6 : f32 to vector<16x64xf32>
    %10 = arith.maximumf %8, %9 : vector<16x64xf32>
    %11 = tpu.iota {dimensions = array<i32: 0>} : vector<16x64xi32>
    %c16_i32 = arith.constant 16 : i32
    %12 = arith.muli %arg0, %c16_i32 : i32
    %13 = vector.broadcast %12 : i32 to vector<16x64xi32>
    %14 = arith.addi %11, %13 : vector<16x64xi32>
    %15 = tpu.iota {dimensions = array<i32: 1>} : vector<16x64xi32>
    %c64_i32 = arith.constant 64 : i32
    %16 = arith.muli %arg1, %c64_i32 : i32
    %17 = vector.broadcast %16 : i32 to vector<16x64xi32>
    %18 = arith.addi %15, %17 : vector<16x64xi32>
    %c-1640531535_i32 = arith.constant -1640531535 : i32
    %19 = vector.broadcast %c-1640531535_i32 : i32 to vector<16x64xi32>
    %20 = arith.muli %14, %19 : vector<16x64xi32>
    %c-2048144777_i32 = arith.constant -2048144777 : i32
    %21 = vector.broadcast %c-2048144777_i32 : i32 to vector<16x64xi32>
    %22 = arith.muli %18, %21 : vector<16x64xi32>
    %23 = arith.addi %20, %22 : vector<16x64xi32>
    %c42_i32 = arith.constant 42 : i32
    %24 = vector.broadcast %c42_i32 : i32 to vector<16x64xi32>
    %25 = arith.addi %23, %24 : vector<16x64xi32>
    %c15_i32 = arith.constant 15 : i32
    %26 = vector.broadcast %c15_i32 : i32 to vector<16x64xi32>
    %27 = arith.shrui %25, %26 : vector<16x64xi32>
    %28 = arith.xori %25, %27 : vector<16x64xi32>
    %c739982445_i32 = arith.constant 739982445 : i32
    %29 = vector.broadcast %c739982445_i32 : i32 to vector<16x64xi32>
    %30 = arith.muli %28, %29 : vector<16x64xi32>
    %c12_i32 = arith.constant 12 : i32
    %31 = vector.broadcast %c12_i32 : i32 to vector<16x64xi32>
    %32 = arith.shrui %30, %31 : vector<16x64xi32>
    %33 = arith.xori %30, %32 : vector<16x64xi32>
    %c695872825_i32 = arith.constant 695872825 : i32
    %34 = vector.broadcast %c695872825_i32 : i32 to vector<16x64xi32>
    %35 = arith.muli %33, %34 : vector<16x64xi32>
    %c15_i32_7 = arith.constant 15 : i32
    %36 = vector.broadcast %c15_i32_7 : i32 to vector<16x64xi32>
    %37 = arith.shrui %35, %36 : vector<16x64xi32>
    %38 = arith.xori %35, %37 : vector<16x64xi32>
    %c429496729_i32 = arith.constant 429496729 : i32
    %39 = vector.broadcast %c429496729_i32 : i32 to vector<16x64xi32>
    %40 = arith.cmpi uge, %38, %39 : vector<16x64xi32>
    %cst_8 = arith.constant 1.11111116 : f32
    %41 = vector.broadcast %cst_8 : f32 to vector<16x64xf32>
    %42 = arith.mulf %10, %41 : vector<16x64xf32>
    %cst_9 = arith.constant 0.000000e+00 : f32
    %43 = vector.broadcast %cst_9 : f32 to vector<16x64xf32>
    %44 = arith.select %40, %42, %43 : vector<16x64xi1>, vector<16x64xf32>
    %c0_10 = arith.constant 0 : index
    %c0_11 = arith.constant 0 : index
    %45 = vector.load %arg8[%c0_10, %c0_11] : memref<16x32xf32, #tpu.memory_space<vmem>>, vector<16x32xf32>
    %c0_12 = arith.constant 0 : index
    %c0_13 = arith.constant 0 : index
    %46 = vector.load %arg5[%c0_12, %c0_13] : memref<64x32xf32, #tpu.memory_space<vmem>>, vector<64x32xf32>
    %cst_14 = arith.constant dense<0.000000e+00> : vector<16x32xf32>
    %47 = tpu.matmul %44, %46, %cst_14 {dimension_numbers = #tpu.dot_dimension_numbers<[1], [0], [0], [1], [0, 0, 1, 1], [], []>} : vector<16x64xf32>, vector<64x32xf32>, vector<16x32xf32> -> vector<16x32xf32>
    %48 = arith.addf %45, %47 : vector<16x32xf32>
    %c0_15 = arith.constant 0 : index
    %c0_16 = arith.constant 0 : index
    %49 = vector.load %arg8[%c0_15, %c0_16] : memref<16x32xf32, #tpu.memory_space<vmem>>, vector<16x32xf32>
    tpu.vector_store %arg8[%c0_15, %c0_16], %48 {strides = array<i32>} : memref<16x32xf32, #tpu.memory_space<vmem>>, vector<16x32xf32>,
    %c0_i32_17 = arith.constant 0 : i32
    %50 = arith.cmpi eq, %arg1, %c0_i32_17 : i32
    %51 = arith.extui %50 : i1 to i32
    %c0_i32_18 = arith.constant 0 : i32
    %52 = arith.cmpi ne, %51, %c0_i32_18 : i32
    scf.if %52 {
      %c0_19 = arith.constant 0 : index
      %c0_20 = arith.constant 0 : index
      %53 = vector.load %arg8[%c0_19, %c0_20] : memref<16x32xf32, #tpu.memory_space<vmem>>, vector<16x32xf32>
      %c0_21 = arith.constant 0 : index
      %c0_22 = arith.constant 0 : index
      %54 = vector.load %arg6[%c0_21, %c0_22] : memref<1x32xf32, #tpu.memory_space<vmem>>, vector<1x32xf32>
      %55 = vector.broadcast %54 : vector<1x32xf32> to vector<16x32xf32>
      %56 = arith.addf %53, %55 : vector<16x32xf32>
      %c0_23 = arith.constant 0 : index
      %c0_24 = arith.constant 0 : index
      %57 = vector.load %arg7[%c0_23, %c0_24] : memref<16x32xf32, #tpu.memory_space<vmem>>, vector<16x32xf32>
      tpu.vector_store %arg7[%c0_23, %c0_24], %56 {strides = array<i32>} : memref<16x32xf32, #tpu.memory_space<vmem>>, vector<16x32xf32>,
    } else {
    }
    return
  }
  func.func @transform_0(%arg0: i32, %arg1: i32) -> (i32, i32) {
    %c0_i32 = arith.constant 0 : i32
    %c0_i32_0 = arith.constant 0 : i32
    return %arg0, %c0_i32 : i32, i32
  }
  func.func @transform_1(%arg0: i32, %arg1: i32) -> (i32, i32) {
    %c0_i32 = arith.constant 0 : i32
    %c0_i32_0 = arith.constant 0 : i32
    return %c0_i32, %arg1 : i32, i32
  }
  func.func @transform_2(%arg0: i32, %arg1: i32) -> (i32, i32) {
    %c0_i32 = arith.constant 0 : i32
    %c0_i32_0 = arith.constant 0 : i32
    return %c0_i32, %arg1 : i32, i32
  }
  func.func @transform_3(%arg0: i32, %arg1: i32) -> (i32, i32) {
    %c0_i32 = arith.constant 0 : i32
    %c0_i32_0 = arith.constant 0 : i32
    return %arg1, %c0_i32 : i32, i32
  }
  func.func @transform_4(%arg0: i32, %arg1: i32) -> (i32, i32) {
    %c0_i32 = arith.constant 0 : i32
    %c0_i32_0 = arith.constant 0 : i32
    %c0_i32_1 = arith.constant 0 : i32
    return %c0_i32, %c0_i32_0 : i32, i32
  }
  func.func @transform_5(%arg0: i32, %arg1: i32) -> (i32, i32) {
    %c0_i32 = arith.constant 0 : i32
    %c0_i32_0 = arith.constant 0 : i32
    return %arg0, %c0_i32 : i32, i32
  }
}

</mosaic_0001>

<llo_original>
// kernel: tpu_custom_call.1
$region0: #{tpu_custom_call.1}
  #allocation0 [shape = 'u32[]', space=smem, size = 0x4, offset = 0x4, fixed_abs, tag = 'smem constant byte address 0x4 - core index']
  #allocation1 [shape = 'u32[144,128]{1,0:T(1,128)}', space=vmem, size = 0x12000, scoped, tag = 'internal scratch']
  #allocation2 [shape = 'f32[16,32]{1,0:T(8,128)}', space=vmem, size = 0x2000, scoped, tag = 'scratch operand']
  %s0 = inlined_call_operand.vmem [shape: f32[16,32], index: 0, kind: input, shape index: {}]
  %s1 = inlined_call_operand.vmem [shape: f32[32,64], index: 1, kind: input, shape index: {}]
  %s2 = inlined_call_operand.vmem [shape: f32[1,64], index: 2, kind: input, shape index: {}]
  %s3 = inlined_call_operand.vmem [shape: f32[64,32], index: 3, kind: input, shape index: {}]
  %s4 = inlined_call_operand.vmem [shape: f32[1,32], index: 4, kind: input, shape index: {}]
  %s5 = inlined_call_operand.hbm [shape: f32[16,32], index: 5, kind: output, shape index: {}]
  %s6 = sld [smem:[#allocation0]]
  $region38: #{tpu_custom_call.1} parent=0
    _
  %s8 = ssub.s32 1, %s6
  %s9 = scalar_select 0, %s8, %s6
  $region1: #{tpu_custom_call.1} parent=0
    #allocation3 [shape = 'u8[8192]{0}', space=vmem, size = 0x2000, scoped, tag = 'output window, operand 0, single buffered']
    #allocation4 [shape = 's32[1]{0}', space=sflag, size = 0x4, scoped, tag = 'scoped memory for tpu_custom_call.1']
    %10 = vsyncpa [#allocation4], 0
    // Predicated region
    $region2: #{tpu_custom_call.1} parent=1 // pred_check
      _
    $region3: #{tpu_custom_call.1} parent=1 // pred_check_branch
      %12 = sbr.rel (0) target = $region5
    $region4: #{tpu_custom_call.1} parent=1 // pred_region
      _
    $region5: #{tpu_custom_call.1} parent=1 // pred_fallthru
      _
    // Predicated region
    $region6: #{tpu_custom_call.1} parent=1 // pred_check
      _
    $region7: #{tpu_custom_call.1} parent=1 // pred_check_branch
      %14 = sbr.rel (0) target = $region9
    $region8: #{tpu_custom_call.1} parent=1 // pred_region
      _
    $region9: #{tpu_custom_call.1} parent=1 // pred_fallthru
      _
    // Predicated region
    $region10: #{tpu_custom_call.1} parent=1 // pred_check
      _
    $region11: #{tpu_custom_call.1} parent=1 // pred_check_branch
      %16 = sbr.rel (0) target = $region13
    $region12: #{tpu_custom_call.1} parent=1 // pred_region
      _
    $region13: #{tpu_custom_call.1} parent=1 // pred_fallthru
      _
    // Predicated region
    $region14: #{tpu_custom_call.1} parent=1 // pred_check
      _
    $region15: #{tpu_custom_call.1} parent=1 // pred_check_branch
      %18 = sbr.rel (0) target = $region17
    $region16: #{tpu_custom_call.1} parent=1 // pred_region
      _
    $region17: #{tpu_custom_call.1} parent=1 // pred_fallthru
      _
    // Predicated region
    $region18: #{tpu_custom_call.1} parent=1 // pred_check
      _
    $region19: #{tpu_custom_call.1} parent=1 // pred_check_branch
      %20 = sbr.rel (0) target = $region21
    $region20: #{tpu_custom_call.1} parent=1 // pred_region
      _
    $region21: #{tpu_custom_call.1} parent=1 // pred_fallthru
      _
    %p21 = scmp.eq.s32.totalorder 0, 0
    // Predicated region
    $region22: #{tpu_custom_call.1} parent=1 // pred_check
      %p22 = pneg %p21
    $region23: #{tpu_custom_call.1} parent=1 // pred_check_branch
      %24 = sbr.rel (%p22) target = $region25
    $region24: #{tpu_custom_call.1} parent=1 // pred_region
      %vm25 = vcmask 261120
      %26 = vst.msk [vmem:[#allocation2] sm:$0xff] %vm25, 0.0
      %27 = vst.msk [vmem:[#allocation2 + $0x8] sm:$0xff] %vm25, 0.0
    $region25: #{tpu_custom_call.1} parent=1 // pred_fallthru
      _
    %v28 = vld [vmem:[%s0] sm:$0xff]
    %v29 = vld [vmem:[%s0 + $0x8] sm:$0xff]
    %v30 = vld [vmem:[%s1] sm:$0xff]
    %v31 = vld [vmem:[%s1 + $0x8] sm:$0xff]
    %v32 = vld [vmem:[%s1 + $0x10] sm:$0xff]
    %v33 = vld [vmem:[%s1 + $0x18] sm:$0xff]
    %v34 = vld [vmem:[%s2] sm:$0x1]
    %v36 = vlaneseq
    %v37 = vshrl.u32 %v36, 7
    %v38 = vsub.s32 0, %v37
    %v39 = vrot.slane %v34, %v38
    %vm41 = vcmask 261120
    %v43 = vsel %vm41, %v28, 0
    %v46 = vsel %vm41, %v29, 0
    %48 = vmatprep.subr.mxu0 0.0
    %49 = vmatpush1.msra.mxu0 %v30
    %50 = vmatprep.subr.mxu0 0.0
    %51 = vmatpush1.msra.mxu0 %v31
    %52 = vmatprep.subr.mxu0 0.0
    %53 = vmatpush1.msra.mxu0 %v32
    %54 = vmatprep.subr.mxu0 0.0
    %55 = vmatpush1.msra.mxu0 %v33
    %56 = vmatprep.subr.mxu0 0.0
    %57 = vmatpush1.msra.mxu0 0.0
    %58 = vmatprep.subr.mxu0 0.0
    %59 = vmatpush1.msra.mxu0 0.0
    %60 = vmatprep.subr.mxu0 0.0
    %61 = vmatpush1.msra.mxu0 0.0
    %62 = vmatprep.subr.mxu0 0.0
    %63 = vmatpush1.msra.mxu0 0.0
    %64 = vmatprep.subr.mxu0 0.0
    %65 = vmatpush1.msra.mxu0 0.0
    %66 = vmatprep.subr.mxu0 0.0
    %67 = vmatpush1.msra.mxu0 0.0
    %68 = vmatprep.subr.mxu0 0.0
    %69 = vmatpush1.msra.mxu0 0.0
    %70 = vmatprep.subr.mxu0 0.0
    %71 = vmatpush1.msra.mxu0 0.0
    %72 = vmatprep.subr.mxu0 0.0
    %73 = vmatpush1.msra.mxu0 0.0
    %74 = vmatprep.subr.mxu0 0.0
    %75 = vmatpush1.msra.mxu0 0.0
    %76 = vmatprep.subr.mxu0 0.0
    %77 = vmatpush1.msra.mxu0 0.0
    %78 = vmatprep.subr.mxu0 0.0
    %79 = vmatpush1.msra.mxu0 0.0
    %80 = vmatprep.subr.mxu0 0.0
    %81 = vmatpush1.msra.mxu0 0.0
    %82 = vmatprep.subr.mxu0 0.0
    %83 = vmatpush1.msra.mxu0 0.0
    %84 = vmatprep.subr.mxu0 0.0
    %85 = vmatpush1.msra.mxu0 0.0
    %86 = vmatprep.subr.mxu0 0.0
    %87 = vmatpush1.msra.mxu0 0.0
    %88 = vmatprep.subr.mxu0 0.0
    %89 = vmatpush1.msra.mxu0 0.0
    %90 = vmatprep.subr.mxu0 0.0
    %91 = vmatpush1.msra.mxu0 0.0
    %92 = vmatprep.subr.mxu0 0.0
    %93 = vmatpush1.msra.mxu0 0.0
    %94 = vmatprep.subr.mxu0 0.0
    %95 = vmatpush1.msra.mxu0 0.0
    %96 = vmatprep.subr.mxu0 0.0
    %97 = vmatpush1.msra.mxu0 0.0
    %98 = vmatprep.subr.mxu0 0.0
    %99 = vmatpush1.msra.mxu0 0.0
    %100 = vmatprep.subr.mxu0 0.0
    %101 = vmatpush1.msra.mxu0 0.0
    %102 = vmatprep.subr.mxu0 0.0
    %103 = vmatpush1.msra.mxu0 0.0
    %104 = vmatprep.subr.mxu0 0.0
    %105 = vmatpush1.msra.mxu0 0.0
    %106 = vmatprep.subr.mxu0 0.0
    %107 = vmatpush1.msra.mxu0 0.0
    %108 = vmatprep.subr.mxu0 0.0
    %109 = vmatpush1.msra.mxu0 0.0
    %110 = vmatprep.subr.mxu0 0.0
    %111 = vmatpush1.msra.mxu0 0.0
    %112 = vmatprep.mubr.f32.mxu0 0.0
    %113 = vmatmul.mubr.f32.gmra.mrb[0].mxu0 %v43
    %v114 = vpop.f32.mrb[0].mxu0
    %v115 = vadd.f32 %v39, %v114
    %v116 = vpop.f32.mrb[0].mxu0
    %117 = vmatprep.mubr.f32.mxu0 0.0
    %118 = vmatmul.mubr.f32.gmra.mrb[0].mxu0 %v46
    %v119 = vpop.f32.mrb[0].mxu0
    %v120 = vadd.f32 %v39, %v119
    %v121 = vpop.f32.mrb[0].mxu0
    %122 = vdwg.mxu0
    %v123 = vmax.f32 %v115, 0.0
    %v124 = vmax.f32 %v120, 0.0
    %v125 = vlaneseq
    %v126 = vshrl.u32 %v125, 7
    %v127 = vadd.s32 %v126, 8
    %s128 = smul.u32 0, 16
    %v129 = vstv %s128
    %v130 = vadd.s32 %v126, %v129
    %v131 = vadd.s32 %v127, %v129
    %v132 = vlaneseq
    %v133 = vand.u32 %v132, 127
    %s134 = smul.u32 0, 64
    %v135 = vstv %s134
    %v136 = vadd.s32 %v133, %v135
    %v137 = vmul.u32 %v130, 2654435761
    %v138 = vmul.u32 %v131, 2654435761
    %v139 = vmul.u32 %v136, 2246822519
    %v140 = vadd.s32 %v137, %v139
    %v141 = vadd.s32 %v138, %v139
    %v142 = vadd.s32 %v140, 42
    %v143 = vadd.s32 %v141, 42
    %v144 = vshrl.u32 %v142, 15
    %v145 = vshrl.u32 %v143, 15
    %v146 = vxor.u32 %v142, %v144
    %v147 = vxor.u32 %v143, %v145
    %v148 = vmul.u32 %v146, 739982445
    %v149 = vmul.u32 %v147, 739982445
    %v150 = vshrl.u32 %v148, 12
    %v151 = vshrl.u32 %v149, 12
    %v152 = vxor.u32 %v148, %v150
    %v153 = vxor.u32 %v149, %v151
    %v154 = vmul.u32 %v152, 695872825
    %v155 = vmul.u32 %v153, 695872825
    %v156 = vshrl.u32 %v154, 15
    %v157 = vshrl.u32 %v155, 15
    %v158 = vxor.u32 %v154, %v156
    %v159 = vxor.u32 %v155, %v157
    %vm160 = vcmp.ge.u32.totalorder %v158, 429496729
    %vm161 = vcmp.ge.u32.totalorder %v159, 429496729
    %v162 = vmul.f32 %v123, 1.1111112
    %v163 = vmul.f32 %v124, 1.1111112
    %v164 = vsel %vm160, %v162, 0.0
    %v165 = vsel %vm161, %v163, 0.0
    %v166 = vld [vmem:[#allocation2] sm:$0xff]
    %v167 = vld [vmem:[#allocation2 + $0x8] sm:$0xff]
    %v168 = vld [vmem:[%s3] sm:$0xff]
    %v169 = vld [vmem:[%s3 + $0x8] sm:$0xff]
    %v170 = vld [vmem:[%s3 + $0x10] sm:$0xff]
    %v171 = vld [vmem:[%s3 + $0x18] sm:$0xff]
    %v172 = vld [vmem:[%s3 + $0x20] sm:$0xff]
    %v173 = vld [vmem:[%s3 + $0x28] sm:$0xff]
    %v174 = vld [vmem:[%s3 + $0x30] sm:$0xff]
    %v175 = vld [vmem:[%s3 + $0x38] sm:$0xff]
    %vm176 = vcmask 523264
    %v178 = vsel %vm176, %v164, 0
    %v181 = vsel %vm176, %v165, 0
    %183 = vmatprep.subr.mxu0 0.0
    %184 = vmatpush1.msra.mxu0 %v168
    %185 = vmatprep.subr.mxu0 0.0
    %186 = vmatpush1.msra.mxu0 %v169
    %187 = vmatprep.subr.mxu0 0.0
    %188 = vmatpush1.msra.mxu0 %v170
    %189 = vmatprep.subr.mxu0 0.0
    %190 = vmatpush1.msra.mxu0 %v171
    %191 = vmatprep.subr.mxu0 0.0
    %192 = vmatpush1.msra.mxu0 %v172
    %193 = vmatprep.subr.mxu0 0.0
    %194 = vmatpush1.msra.mxu0 %v173
    %195 = vmatprep.subr.mxu0 0.0
    %196 = vmatpush1.msra.mxu0 %v174
    %197 = vmatprep.subr.mxu0 0.0
    %198 = vmatpush1.msra.mxu0 %v175
    %199 = vmatprep.subr.mxu0 0.0
    %200 = vmatpush1.msra.mxu0 0.0
    %201 = vmatprep.subr.mxu0 0.0
    %202 = vmatpush1.msra.mxu0 0.0
    %203 = vmatprep.subr.mxu0 0.0
    %204 = vmatpush1.msra.mxu0 0.0
    %205 = vmatprep.subr.mxu0 0.0
    %206 = vmatpush1.msra.mxu0 0.0
    %207 = vmatprep.subr.mxu0 0.0
    %208 = vmatpush1.msra.mxu0 0.0
    %209 = vmatprep.subr.mxu0 0.0
    %210 = vmatpush1.msra.mxu0 0.0
    %211 = vmatprep.subr.mxu0 0.0
    %212 = vmatpush1.msra.mxu0 0.0
    %213 = vmatprep.subr.mxu0 0.0
    %214 = vmatpush1.msra.mxu0 0.0
    %215 = vmatprep.subr.mxu0 0.0
    %216 = vmatpush1.msra.mxu0 0.0
    %217 = vmatprep.subr.mxu0 0.0
    %218 = vmatpush1.msra.mxu0 0.0
    %219 = vmatprep.subr.mxu0 0.0
    %220 = vmatpush1.msra.mxu0 0.0
    %221 = vmatprep.subr.mxu0 0.0
    %222 = vmatpush1.msra.mxu0 0.0
    %223 = vmatprep.subr.mxu0 0.0
    %224 = vmatpush1.msra.mxu0 0.0
    %225 = vmatprep.subr.mxu0 0.0
    %226 = vmatpush1.msra.mxu0 0.0
    %227 = vmatprep.subr.mxu0 0.0
    %228 = vmatpush1.msra.mxu0 0.0
    %229 = vmatprep.subr.mxu0 0.0
    %230 = vmatpush1.msra.mxu0 0.0
    %231 = vmatprep.subr.mxu0 0.0
    %232 = vmatpush1.msra.mxu0 0.0
    %233 = vmatprep.subr.mxu0 0.0
    %234 = vmatpush1.msra.mxu0 0.0
    %235 = vmatprep.subr.mxu0 0.0
    %236 = vmatpush1.msra.mxu0 0.0
    %237 = vmatprep.subr.mxu0 0.0
    %238 = vmatpush1.msra.mxu0 0.0
    %239 = vmatprep.subr.mxu0 0.0
    %240 = vmatpush1.msra.mxu0 0.0
    %241 = vmatprep.subr.mxu0 0.0
    %242 = vmatpush1.msra.mxu0 0.0
    %243 = vmatprep.subr.mxu0 0.0
    %244 = vmatpush1.msra.mxu0 0.0
    %245 = vmatprep.subr.mxu0 0.0
    %246 = vmatpush1.msra.mxu0 0.0
    %247 = vmatprep.mubr.f32.mxu0 0.0
    %248 = vmatmul.mubr.f32.gmra.mrb[0].mxu0 %v178
    %v249 = vpop.f32.mrb[0].mxu0
    %v250 = vadd.f32 0.0, %v249
    %v251 = vpop.f32.mrb[0].mxu0
    %252 = vmatprep.mubr.f32.mxu0 0.0
    %253 = vmatmul.mubr.f32.gmra.mrb[0].mxu0 %v181
    %v254 = vpop.f32.mrb[0].mxu0
    %v255 = vadd.f32 0.0, %v254
    %v256 = vpop.f32.mrb[0].mxu0
    %257 = vdwg.mxu0
    %v258 = vadd.f32 %v166, %v250
    %v259 = vadd.f32 %v167, %v255
    %260 = vst.msk [vmem:[#allocation2] sm:$0xff] %vm41, %v258
    %261 = vst.msk [vmem:[#allocation2 + $0x8] sm:$0xff] %vm41, %v259
    // Predicated region
    $region26: #{tpu_custom_call.1} parent=1 // pred_check
      %p262 = pneg %p21
    $region27: #{tpu_custom_call.1} parent=1 // pred_check_branch
      %264 = sbr.rel (%p262) target = $region29
    $region28: #{tpu_custom_call.1} parent=1 // pred_region
      %v265 = vld [vmem:[#allocation2] sm:$0xff]
      %v266 = vld [vmem:[#allocation2 + $0x8] sm:$0xff]
      %v267 = vld [vmem:[%s4] sm:$0x1]
      %v269 = vlaneseq
      %v270 = vshrl.u32 %v269, 7
      %v271 = vsub.s32 0, %v270
      %v272 = vrot.slane %v267, %v271
      %v274 = vadd.f32 %v265, %v272
      %v275 = vadd.f32 %v266, %v272
      %276 = vst.msk [vmem:[#allocation3] sm:$0xff] %vm41, %v274
      %277 = vst.msk [vmem:[#allocation3 + $0x8] sm:$0xff] %vm41, %v275
    $region29: #{tpu_custom_call.1} parent=1 // pred_fallthru
      _
    // Predicated region
    $region30: #{tpu_custom_call.1} parent=1 // pred_check
      _
    $region31: #{tpu_custom_call.1} parent=1 // pred_check_branch
      %279 = sbr.rel (0) target = $region33
    $region32: #{tpu_custom_call.1} parent=1 // pred_region
      %s281 = ssub.s32 256, 256
      %282 = vsyncadd [#allocation4], %s281
      %s283 = sshll.u32 [#allocation3], 4
      %s284 = int_to_ptr.vmem [resolvable:$true] %s283
      %289 = dma.vmem_to_hbm [thread:$0]  %s284, 256, %s5, [#allocation4], 128, 128, 8
    $region33: #{tpu_custom_call.1} parent=1 // pred_fallthru
      _
    // Predicated region
    $region34: #{tpu_custom_call.1} parent=1 // pred_check
      _
    $region35: #{tpu_custom_call.1} parent=1 // pred_check_branch
      %291 = sbr.rel (0) target = $region37
    $region36: #{tpu_custom_call.1} parent=1 // pred_region
      %292 = dma.done [#allocation4], 256
    $region37: #{tpu_custom_call.1} parent=1 // pred_fallthru
      _
    %293 = vsyncpa [#allocation4], 1

</llo_original>
